<compile_context>
chip_gen: v7x
topology: tpu7x:2x2x1
jax: 0.10.0
libtpu: 0.0.40
codegen_flags: <defaults>
</compile_context>

<pallas_src>
import math

import jax
import jax.numpy as jnp
from jax.experimental import pallas as pl
from jax.experimental.pallas import tpu as pltpu


def build_sinusoidal_pe(d_model, max_len=5000, dtype=jnp.float32):
    """One-time buffer, identical to the PyTorch __init__ (plain-JAX setup).

    max_len is padded up to a multiple of 128 so the (L, D) -> (L*D/128, 128)
    lane-dense flattening inside the kernel wrapper is always a free reshape.
    The extra rows hold valid PE values for positions >= max_len and are
    never read.  Build with dtype=x.dtype to halve pe HBM/VMEM traffic when
    running in bf16.
    """
    max_len_padded = ((max_len + 127) // 128) * 128
    position = jnp.arange(0, max_len_padded, dtype=jnp.float32)[:, None]     # (L, 1)
    div_term = jnp.exp(jnp.arange(0, d_model, 2, dtype=jnp.float32)
                       * (-math.log(10000.0) / d_model))                     # (D/2,)
    angles = position * div_term                                             # (L, D/2)
    pe = jnp.zeros((max_len_padded, d_model), dtype=jnp.float32)
    pe = pe.at[:, 0::2].set(jnp.sin(angles))
    pe = pe.at[:, 1::2].set(jnp.cos(angles))
    return pe[None, :, :].astype(dtype)                                      # (1, L, D)


def _add_pe_kernel(x_ref, pe_ref, o_ref):
    # pe block is (1, ts, d2) and broadcasts over the folded-batch dim.
    # The cast is a no-op when pe is built in the compute dtype (recommended)
    # and free otherwise (VPU has huge slack in a mem-bound add).
    # NOTE: matches PyTorch's return dtype only when pe and x share a dtype.
    o_ref[...] = x_ref[...] + pe_ref[...].astype(x_ref.dtype)


def _choose_tiles(b, s2, row_bytes, itemsize, target_bytes):
    """Pick (batch_tile, row_tile) so one x/out block is ~target_bytes.

    Row tiles are multiples of the dtype-aware sublane packing (8 rows f32,
    16 bf16, 32 int8/fp8) whenever the row extent allows; ragged tails are
    left to cdiv + partial-block masking instead of slicing inputs.
    """
    align = max(8, 32 // max(int(itemsize), 1))
    per_batch = s2 * row_bytes
    if per_batch <= target_bytes:
        # Short sequences: fold batch elements into the block to keep DMAs big.
        ts = (s2 // align) * align if s2 >= align else s2
        ts = ts if ts > 0 else s2
        tb = max(1, min(b, target_bytes // max(ts * row_bytes, 1)))
        return tb, ts
    # Long sequences: one batch element per block, tile the row axis
    # (ts < s2 here, so the seq grid axis has >= 2 tiles for megacore).
    ts = max(align, (target_bytes // max(row_bytes, 1)) // align * align)
    return 1, min(ts, s2)


def sinusoidal_positional_embedding(
    x, pe, *,
    target_tile_bytes=4 << 20,       # ~4 MiB blocks: good on v5e/v6e/v7x
    vmem_limit_bytes=48 << 20,       # above every scoped default, < 64 MiB (v7x)
    min_kernel_bytes=256 << 10,      # tiny inputs: plain-JAX add is faster
):
    """forward(x) = x + pe[:, :seq_len, :]   (x: (B, S, D), pe: (1, L, D))."""
    b, s, d = x.shape
    max_len = pe.shape[1]
    assert s <= max_len
    itemsize = x.dtype.itemsize

    # Small-input bypass (kernel launch + per-step overhead dominates).
    if b * s * d * itemsize < min_kernel_bytes:
        return x + pe[:, :s, :].astype(x.dtype)

    # ---- layout: keep the last (lane) dim a multiple of 128 ----
    if d % 128 == 0:
        s2, d2 = s, d
        x_in, pe_in, pe_rows = x, pe, max_len
    elif (s * d) % 128 == 0:
        d2 = 128
        s2 = (s * d) // d2
        x_in = x.reshape(b, s2, d2)                      # free: contiguous
        if (max_len * d) % d2 == 0:
            pe_rows = (max_len * d) // d2
            pe_in = pe.reshape(1, pe_rows, d2)           # free: contiguous
        else:
            # Only reached if pe was not built via build_sinusoidal_pe (which
            # pads max_len); costs one small out-of-pipeline copy of S*D.
            pe_rows = s2
            pe_in = pe[:, :s, :].reshape(1, s2, d2)
    else:
        # Lane-sparse fallback (masked partial stores), still correct.
        # TODO(synk): pad d_model to a multiple of 128 at build time to make
        # this path lane-dense as well.
        s2, d2 = s, d
        x_in, pe_in, pe_rows = x, pe, max_len

    # ---- tiling ----
    tb, ts = _choose_tiles(b, s2, d2 * itemsize, itemsize, target_tile_bytes)
    if ts % 8 != 0 and ts != pe_rows:
        # Block rows must be a multiple of 8 OR equal the array's full row
        # extent.  This branch only triggers when the whole per-batch row
        # extent is < 8 rows, so the slice copies at most 7 rows (negligible).
        pe_in = pe_in[:, :ts, :]
        pe_rows = ts

    grid = (pl.cdiv(s2, ts), pl.cdiv(b, tb))   # batch innermost -> pe tile reused

    cost = pl.CostEstimate(
        flops=b * s * d,
        transcendentals=0,
        bytes_accessed=2 * b * s * d * itemsize + s * d * pe_in.dtype.itemsize,
    )

    out = pl.pallas_call(
        _add_pe_kernel,
        out_shape=jax.ShapeDtypeStruct((b, s2, d2), x.dtype),
        grid=grid,
        in_specs=[
            pl.BlockSpec((tb, ts, d2), lambda j, i: (i, j, 0)),   # x
            pl.BlockSpec((1, ts, d2), lambda j, i: (0, j, 0)),    # pe (batch-independent)
        ],
        out_specs=pl.BlockSpec((tb, ts, d2), lambda j, i: (i, j, 0)),
        compiler_params=pltpu.CompilerParams(
            dimension_semantics=("parallel", "parallel"),
            vmem_limit_bytes=vmem_limit_bytes,
        ),
        cost_estimate=cost,
        # input_output_aliases={0: 0} would make this an in-place add when the
        # caller no longer needs x (not used here: the demo re-reads x).
    )(x_in, pe_in)

    return out.reshape(b, s, d) if (s2, d2) != (s, d) else out


if __name__ == "__main__":
    d_model, max_len = 32, 5000
    batch, seq = 2, 8

    # Build pe in the compute dtype so no cast/extra DMA bytes are paid.
    pe = build_sinusoidal_pe(d_model, max_len, dtype=jnp.float32)

    key = jax.random.PRNGKey(0)
    x = jax.random.normal(key, (batch, seq, d_model), dtype=jnp.float32)

    # min_kernel_bytes=0 forces the Pallas path for this tiny demo shape
    # (the default bypass would otherwise use the fused XLA add).
    out = jax.block_until_ready(
        sinusoidal_positional_embedding(x, pe, min_kernel_bytes=0))

    # reference check in plain JAX
    ref = x + pe[:, :seq, :]
    assert out.shape == (batch, seq, d_model)
    assert jnp.allclose(out, ref, atol=1e-6, rtol=1e-6)

    print("KERNEL_OK")
</pallas_src>

<mosaic_0001>
module attributes {stable_mosaic.version = 11 : i64} {
  func.func @_add_pe_kernel(%arg0: i32, %arg1: i32, %arg2: memref<2x2x128xf32, #tpu.memory_space<vmem>>, %arg3: memref<1x2x128xf32, #tpu.memory_space<vmem>>, %arg4: memref<2x2x128xf32, #tpu.memory_space<vmem>>) attributes {dimension_semantics = [#tpu.dimension_semantics<parallel>, #tpu.dimension_semantics<parallel>], iteration_bounds = array<i64: 1, 1>, scalar_prefetch = 0 : i64, scratch_operands = 0 : i64, tpu.core_type = #tpu.core_type<tc>, window_params = [{transform_indices = @transform_0, window_bounds = array<i64: 2, 2, 128>}, {transform_indices = @transform_1, window_bounds = array<i64: 1, 2, 128>}, {transform_indices = @transform_2, window_bounds = array<i64: 2, 2, 128>}]} {
    %c0 = arith.constant 0 : index
    %c0_0 = arith.constant 0 : index
    %c0_1 = arith.constant 0 : index
    %0 = vector.load %arg2[%c0, %c0_0, %c0_1] : memref<2x2x128xf32, #tpu.memory_space<vmem>>, vector<2x2x128xf32>
    %c0_2 = arith.constant 0 : index
    %c0_3 = arith.constant 0 : index
    %c0_4 = arith.constant 0 : index
    %1 = vector.load %arg3[%c0_2, %c0_3, %c0_4] : memref<1x2x128xf32, #tpu.memory_space<vmem>>, vector<1x2x128xf32>
    %2 = vector.broadcast %1 : vector<1x2x128xf32> to vector<2x2x128xf32>
    %3 = arith.addf %0, %2 : vector<2x2x128xf32>
    %c0_5 = arith.constant 0 : index
    %c0_6 = arith.constant 0 : index
    %c0_7 = arith.constant 0 : index
    %4 = vector.load %arg4[%c0_5, %c0_6, %c0_7] : memref<2x2x128xf32, #tpu.memory_space<vmem>>, vector<2x2x128xf32>
    tpu.vector_store %arg4[%c0_5, %c0_6, %c0_7], %3 {strides = array<i32>} : memref<2x2x128xf32, #tpu.memory_space<vmem>>, vector<2x2x128xf32>,
    return
  }
  func.func @transform_0(%arg0: i32, %arg1: i32) -> (i32, i32, i32) {
    %c0_i32 = arith.constant 0 : i32
    %c0_i32_0 = arith.constant 0 : i32
    return %arg1, %arg0, %c0_i32 : i32, i32, i32
  }
  func.func @transform_1(%arg0: i32, %arg1: i32) -> (i32, i32, i32) {
    %c0_i32 = arith.constant 0 : i32
    %c0_i32_0 = arith.constant 0 : i32
    %c0_i32_1 = arith.constant 0 : i32
    return %c0_i32, %arg0, %c0_i32_0 : i32, i32, i32
  }
  func.func @transform_2(%arg0: i32, %arg1: i32) -> (i32, i32, i32) {
    %c0_i32 = arith.constant 0 : i32
    %c0_i32_0 = arith.constant 0 : i32
    return %arg1, %arg0, %c0_i32 : i32, i32, i32
  }
}

</mosaic_0001>

<llo_original>
// kernel: tpu_custom_call.1
$region0: #{tpu_custom_call.1}
  #allocation0 [shape = 'u32[]', space=smem, size = 0x4, offset = 0x4, fixed_abs, tag = 'smem constant byte address 0x4 - core index']
  #allocation1 [shape = 'u32[144,128]{1,0:T(1,128)}', space=vmem, size = 0x12000, scoped, tag = 'internal scratch']
  %s0 = inlined_call_operand.hbm [shape: f32[2,2,128], index: 0, kind: input, shape index: {}]
  %s1 = inlined_call_operand.vmem [shape: f32[1,2,128], index: 1, kind: input, shape index: {}]
  %s2 = inlined_call_operand.hbm [shape: f32[2,2,128], index: 2, kind: output, shape index: {}]
  %s3 = sld [smem:[#allocation0]]
  $region22: #{tpu_custom_call.1} parent=0
    _
  %s5 = ssub.s32 1, %s3
  %s6 = scalar_select 0, %s5, %s3
  $region1: #{tpu_custom_call.1} parent=0
    #allocation2 [shape = 'u8[2048]{0}', space=vmem, size = 0x800, scoped, tag = 'input window, operand 0, single buffered']
    #allocation3 [shape = 's32[1]{0}', space=sflag, size = 0x4, scoped, tag = 'scoped memory for tpu_custom_call.1']
    #allocation4 [shape = 's32[1]{0}', space=sflag, size = 0x4, scoped, tag = 'scoped memory for tpu_custom_call.1']
    #allocation5 [shape = 'u8[2048]{0}', space=vmem, size = 0x800, scoped, tag = 'output window, operand 0, single buffered']
    %7 = vsyncpa [#allocation3], 0
    %8 = vsyncpa [#allocation4], 0
    // Predicated region
    $region2: #{tpu_custom_call.1} parent=1 // pred_check
      _
    $region3: #{tpu_custom_call.1} parent=1 // pred_check_branch
      %10 = sbr.rel (0) target = $region5
    $region4: #{tpu_custom_call.1} parent=1 // pred_region
      %s12 = ssub.s32 64, 64
      %13 = vsyncadd [#allocation3], %s12
      %s14 = sshll.u32 [#allocation2], 4
      %s15 = int_to_ptr.vmem [resolvable:$true] %s14
      %20 = dma.hbm_to_vmem [thread:$0]  %s0, 64, %s15, [#allocation3], 32, 32, 2
    $region5: #{tpu_custom_call.1} parent=1 // pred_fallthru
      _
    // Predicated region
    $region6: #{tpu_custom_call.1} parent=1 // pred_check
      _
    $region7: #{tpu_custom_call.1} parent=1 // pred_check_branch
      %22 = sbr.rel (0) target = $region9
    $region8: #{tpu_custom_call.1} parent=1 // pred_region
      _
    $region9: #{tpu_custom_call.1} parent=1 // pred_fallthru
      _
    // Predicated region
    $region10: #{tpu_custom_call.1} parent=1 // pred_check
      _
    $region11: #{tpu_custom_call.1} parent=1 // pred_check_branch
      %24 = sbr.rel (0) target = $region13
    $region12: #{tpu_custom_call.1} parent=1 // pred_region
      %25 = dma.done [#allocation3], 64
    $region13: #{tpu_custom_call.1} parent=1 // pred_fallthru
      _
    %v26 = vld [vmem:[#allocation2] sm:$0x3]
    %v27 = vld [vmem:[#allocation2 + $0x2] sm:$0x3]
    %v28 = vld [vmem:[%s1] sm:$0x3]
    %v29 = vadd.f32 %v26, %v28
    %v30 = vadd.f32 %v27, %v28
    %31 = vst [vmem:[#allocation5] sm:$0x3] %v29
    %32 = vst [vmem:[#allocation5 + $0x2] sm:$0x3] %v30
    // Predicated region
    $region14: #{tpu_custom_call.1} parent=1 // pred_check
      _
    $region15: #{tpu_custom_call.1} parent=1 // pred_check_branch
      %34 = sbr.rel (0) target = $region17
    $region16: #{tpu_custom_call.1} parent=1 // pred_region
      %s36 = ssub.s32 64, 64
      %37 = vsyncadd [#allocation4], %s36
      %s38 = sshll.u32 [#allocation5], 4
      %s39 = int_to_ptr.vmem [resolvable:$true] %s38
      %44 = dma.vmem_to_hbm [thread:$0]  %s39, 64, %s2, [#allocation4], 32, 32, 2
    $region17: #{tpu_custom_call.1} parent=1 // pred_fallthru
      _
    // Predicated region
    $region18: #{tpu_custom_call.1} parent=1 // pred_check
      _
    $region19: #{tpu_custom_call.1} parent=1 // pred_check_branch
      %46 = sbr.rel (0) target = $region21
    $region20: #{tpu_custom_call.1} parent=1 // pred_region
      %47 = dma.done [#allocation4], 64
    $region21: #{tpu_custom_call.1} parent=1 // pred_fallthru
      _
    %48 = vsyncpa [#allocation3], 1
    %49 = vsyncpa [#allocation4], 1

</llo_original>
